<compile_context>
chip_gen: v5e
topology: v5e:2x2
jax: 0.10.0
libtpu: 0.0.40
codegen_flags: <defaults>
</compile_context>

<pallas_src>
import functools

import jax
import jax.numpy as jnp
from jax.experimental import pallas as pl
from jax.experimental.pallas import tpu as pltpu


def _messager_kernel(state_ref, idx_ref, iota_ref, w1_ref, b1_ref, w2_ref,
                     b2_ref, out_ref, *, scatter_dtype):
    t = pl.program_id(1)  # "arbitrary" reduction axis over edge tiles

    @pl.when(t == 0)
    def _init():
        out_ref[...] = jnp.zeros_like(out_ref)

    # --- message MLP (BatchNorm folded into W1'/b1'): one bf16 MXU matmul ---
    messages = jnp.dot(state_ref[...], w1_ref[...],
                       preferred_element_type=jnp.float32) + b1_ref[...]   # [TE,H_pad] f32

    # --- edge_inf_mlp: Linear(H,1)+Sigmoid as VPU broadcast-mul + lane reduce
    #     (keeps the degenerate N=1 matmul off the MXU). Padded lanes are zero.
    logits = jnp.sum(messages * w2_ref[...], axis=-1, keepdims=True) + b2_ref[0, 0]
    edge_w = jax.nn.sigmoid(logits)                                        # [TE,1] f32
    weighted = messages * edge_w                                           # [TE,H_pad] f32

    # --- scatter_add via pre-transposed one-hot matmul on the MXU:
    #     onehot [N_rec,TE] (bf16) @ weighted [TE,H_pad] (bf16), f32 accumulate.
    #     Receiver iota is a VMEM-resident input; padded edges carry an
    #     out-of-range index -> all-zero one-hot column -> no validity mask.
    onehot = (iota_ref[...] == idx_ref[...]).astype(scatter_dtype)         # [N_rec,TE]
    out_ref[...] += jax.lax.dot_general(
        onehot, weighted.astype(scatter_dtype),
        (((1,), (0,)), ((), ())),
        preferred_element_type=jnp.float32)                                # [N_rec,H_pad]


def _round_up(x, m):
    return ((x + m - 1) // m) * m


def _num_tc_splits():
    """2 on v7x (2 TensorCores/chip), 1 on v5e/v6e (single TC)."""
    try:
        kind = jax.devices()[0].device_kind.lower()
    except Exception:
        return 1
    return 2 if ("v7" in kind or "tpu7" in kind) else 1


def etnn_messager_forward(x_send, x_rec, index, edge_attr, params, *,
                          tile_e=None, n_splits=None,
                          scatter_dtype=jnp.bfloat16):
    """Pallas implementation of ETNNMessagerLayer.forward (training-mode BN)."""
    idx_send = index[0]
    idx_rec = index[1]

    # glue: gather + concat (plain JAX; XLA fuses this with the BN stat pass).
    parts = [x_send[idx_send], x_rec[idx_rec]]
    if edge_attr is not None:
        parts.append(edge_attr)
    state = jnp.concatenate(parts, axis=1).astype(jnp.float32)

    E, D_in = state.shape
    N_rec, H = x_rec.shape

    # BatchNorm1d (training-mode batch statistics, biased variance) folded into
    # the first Linear:  W1' = scale[:,None] * W1,  b1' = b1 + shift @ W1.
    eps = 1e-5
    mean = jnp.mean(state, axis=0)
    var = jnp.mean((state - mean) ** 2, axis=0)
    scale = params["bn_gamma"] / jnp.sqrt(var + eps)
    shift = params["bn_beta"] - mean * scale
    w1 = params["w1"].astype(jnp.float32)
    w1_fold = scale[:, None] * w1                                           # (D_in, H)
    b1_fold = params["b1"].reshape(1, H).astype(jnp.float32) + (shift @ w1)[None, :]

    # lane-dense feature padding
    D_pad = _round_up(D_in, 128)
    H_pad = _round_up(H, 128)

    # edge-dim tiling: n_splits (parallel axis -> 2 TCs on v7x) x tiles x tile_e
    if tile_e is None:
        tile_e = min(1024, max(128, _round_up(E, 128)))
    if n_splits is None:
        n_splits = _num_tc_splits()
    n_tiles = max(1, pl.cdiv(E, tile_e))
    n_splits = max(1, min(n_splits, n_tiles))
    tiles_per_split = max(1, pl.cdiv(n_tiles, n_splits))
    n_total_tiles = n_splits * tiles_per_split
    E_pad = n_total_tiles * tile_e

    # state streamed as bf16 (matmul operand; halves HBM traffic).
    state_p = jnp.pad(state, ((0, E_pad - E), (0, D_pad - D_in))).astype(jnp.bfloat16)
    # Tail edges get an out-of-range destination => zero one-hot column.
    idx_p = jnp.pad(idx_rec.astype(jnp.int32), (0, E_pad - E),
                    constant_values=N_rec).reshape(n_total_tiles, 1, tile_e)
    iota_rec = jnp.arange(N_rec, dtype=jnp.int32).reshape(N_rec, 1)

    w1_p = jnp.pad(w1_fold, ((0, D_pad - D_in), (0, H_pad - H))).astype(jnp.bfloat16)
    b1_p = jnp.pad(b1_fold, ((0, 0), (0, H_pad - H)))                       # f32
    w2_row = jnp.pad(params["w2"].reshape(1, H).astype(jnp.float32),
                     ((0, 0), (0, H_pad - H)))
    b2 = params["b2"].reshape(1, 1).astype(jnp.float32)

    kernel = functools.partial(_messager_kernel, scatter_dtype=scatter_dtype)
    edge_idx = lambda c, t: (c * tiles_per_split + t, 0)
    idx_idx = lambda c, t: (c * tiles_per_split + t, 0, 0)
    bcast_idx = lambda c, t: (0, 0)

    cost = pl.CostEstimate(
        flops=int(2 * E_pad * D_pad * H_pad              # message matmul
                  + 2 * E_pad * N_rec * H_pad            # one-hot scatter matmul
                  + 6 * E_pad * H_pad),                  # elementwise + logits
        transcendentals=int(E_pad),                      # sigmoid
        bytes_accessed=int(E_pad * D_pad * 2 + E_pad * 4 + D_pad * H_pad * 2
                           + n_splits * N_rec * H_pad * 4),
    )

    out = pl.pallas_call(
        kernel,
        out_shape=jax.ShapeDtypeStruct((n_splits, N_rec, H_pad), jnp.float32),
        grid_spec=pltpu.PrefetchScalarGridSpec(
            num_scalar_prefetch=0,
            grid=(n_splits, tiles_per_split),
            in_specs=[
                pl.BlockSpec((tile_e, D_pad), edge_idx),        # state tile (bf16)
                pl.BlockSpec((None, 1, tile_e), idx_idx),       # dest-index row (i32)
                pl.BlockSpec((N_rec, 1), bcast_idx),            # receiver iota (resident)
                pl.BlockSpec((D_pad, H_pad), bcast_idx),        # folded W1 (bf16)
                pl.BlockSpec((1, H_pad), bcast_idx),            # folded b1 (f32)
                pl.BlockSpec((1, H_pad), bcast_idx),            # w2 as a row (f32)
                pl.BlockSpec(memory_space=pltpu.MemorySpace.SMEM),  # b2 scalar
            ],
            # per-split resident accumulator (lane-dense, H_pad >= 128)
            out_specs=pl.BlockSpec((None, N_rec, H_pad), lambda c, t: (c, 0, 0)),
        ),
        compiler_params=pltpu.CompilerParams(
            dimension_semantics=("parallel", "arbitrary"),
            vmem_limit_bytes=48 * 1024 * 1024),
        cost_estimate=cost,
    )(state_p, idx_p, iota_rec, w1_p, b1_p, w2_row, b2)

    # TODO(synk): for large N_rec, sort edges by idx_rec and add a receiver grid
    # axis (or chunk the one-hot over receiver slabs) to bound the O(E*N_rec)
    # scatter cost and its VMEM footprint (matters most on v7x's 64 MiB VMEM).

    out_full = out[0] if n_splits == 1 else jnp.sum(out, axis=0)
    return out_full[:, :H]


def etnn_messager_reference(x_send, x_rec, index, edge_attr, params):
    """Pure-JAX reference (mirrors the PyTorch forward, training-mode BN)."""
    idx_send = index[0]
    idx_rec = index[1]
    state = jnp.concatenate([x_send[idx_send], x_rec[idx_rec]], axis=1)
    if edge_attr is not None:
        state = jnp.concatenate([state, edge_attr], axis=1)
    eps = 1e-5
    mean = jnp.mean(state, axis=0)
    var = jnp.mean((state - mean) ** 2, axis=0)
    normed = (state - mean) / jnp.sqrt(var + eps) * params["bn_gamma"] + params["bn_beta"]
    messages = normed @ params["w1"] + params["b1"]
    edge_w = jax.nn.sigmoid(messages @ params["w2"] + params["b2"])
    weighted = messages * edge_w
    out = jnp.zeros((x_rec.shape[0], x_rec.shape[1]), jnp.float32)
    return out.at[idx_rec].add(weighted)


if __name__ == "__main__":
    # small shapes consistent with the module
    H = 32          # num_hidden
    I = 8           # num_inv (edge_attr features)
    N_SEND = 16
    N_REC = 16
    E = 20          # number of edges
    D_IN = 2 * H + I

    key = jax.random.PRNGKey(0)
    ks = jax.random.split(key, 8)
    x_send = jax.random.normal(ks[0], (N_SEND, H), jnp.float32)
    x_rec = jax.random.normal(ks[1], (N_REC, H), jnp.float32)
    edge_attr = jax.random.normal(ks[2], (E, I), jnp.float32)
    index = jnp.stack([
        jax.random.randint(ks[3], (E,), 0, N_SEND),
        jax.random.randint(ks[4], (E,), 0, N_REC),
    ], axis=0)

    # deterministic synthetic parameters
    params = {
        "bn_gamma": jnp.ones((D_IN,), jnp.float32),       # BatchNorm1d default init
        "bn_beta": jnp.zeros((D_IN,), jnp.float32),
        "w1": 0.1 * jax.random.normal(ks[5], (D_IN, H), jnp.float32),   # Linear(D_in, H)
        "b1": 0.1 * jax.random.normal(ks[6], (1, H), jnp.float32),
        "w2": 0.1 * jax.random.normal(ks[7], (H, 1), jnp.float32),      # Linear(H, 1)
        "b2": jnp.zeros((1, 1), jnp.float32),
    }

    fwd = jax.jit(etnn_messager_forward)
    out = fwd(x_send, x_rec, index, edge_attr, params)
    out = jax.block_until_ready(out)

    ref = etnn_messager_reference(x_send, x_rec, index, edge_attr, params)
    assert out.shape == (N_REC, H)
    # Tolerance reflects bf16 MXU-operand casts (state/W1' and the scatter
    # `weighted`); one-hot is exact and all accumulation is fp32.
    assert jnp.allclose(out, ref, atol=3e-2, rtol=3e-2), "mismatch vs reference"
    print("KERNEL_OK")
</pallas_src>

<mosaic_0001>
module attributes {stable_mosaic.version = 11 : i64} {
  func.func @_messager_kernel(%arg0: i32, %arg1: i32, %arg2: memref<128x128xbf16, #tpu.memory_space<vmem>>, %arg3: memref<1x1x128xi32, #tpu.memory_space<vmem>>, %arg4: memref<16x1xi32, #tpu.memory_space<vmem>>, %arg5: memref<128x128xbf16, #tpu.memory_space<vmem>>, %arg6: memref<1x128xf32, #tpu.memory_space<vmem>>, %arg7: memref<1x128xf32, #tpu.memory_space<vmem>>, %arg8: memref<1x1xf32, #tpu.memory_space<smem>>, %arg9: memref<1x16x128xf32, #tpu.memory_space<vmem>>) attributes {dimension_semantics = [#tpu.dimension_semantics<parallel>, #tpu.dimension_semantics<arbitrary>], iteration_bounds = array<i64: 1, 1>, scalar_prefetch = 0 : i64, scratch_operands = 0 : i64, tpu.core_type = #tpu.core_type<tc>, window_params = [{transform_indices = @transform_0, window_bounds = array<i64: 128, 128>}, {transform_indices = @transform_1, window_bounds = array<i64: 1, 1, 128>}, {pipeline_mode = #tpu.pipeline_mode<synchronous>, transform_indices = @transform_2, window_bounds = array<i64: 16, 1>}, {pipeline_mode = #tpu.pipeline_mode<synchronous>, transform_indices = @transform_3, window_bounds = array<i64: 128, 128>}, {pipeline_mode = #tpu.pipeline_mode<synchronous>, transform_indices = @transform_4, window_bounds = array<i64: 1, 128>}, {pipeline_mode = #tpu.pipeline_mode<synchronous>, transform_indices = @transform_5, window_bounds = array<i64: 1, 128>}, {transform_indices = @transform_6, window_bounds = array<i64: 1, 1>}, {transform_indices = @transform_7, window_bounds = array<i64: 1, 16, 128>}]} {
    %c0_i32 = arith.constant 0 : i32
    %0 = arith.cmpi eq, %arg1, %c0_i32 : i32
    %1 = arith.extui %0 : i1 to i32
    %c0_i32_0 = arith.constant 0 : i32
    %2 = arith.cmpi ne, %1, %c0_i32_0 : i32
    scf.if %2 {
      %cst_24 = arith.constant 0.000000e+00 : f32
      %41 = vector.broadcast %cst_24 : f32 to vector<16x128xf32>
      %c0_25 = arith.constant 0 : index
      %c0_26 = arith.constant 0 : index
      %c0_27 = arith.constant 0 : index
      %42 = vector.load %arg9[%c0_25, %c0_26, %c0_27] : memref<1x16x128xf32, #tpu.memory_space<vmem>>, vector<1x16x128xf32>
      %43 = vector.shape_cast %42 : vector<1x16x128xf32> to vector<16x128xf32>
      %44 = vector.shape_cast %41 : vector<16x128xf32> to vector<1x16x128xf32>
      tpu.vector_store %arg9[%c0_25, %c0_26, %c0_27], %44 {strides = array<i32>} : memref<1x16x128xf32, #tpu.memory_space<vmem>>, vector<1x16x128xf32>,
    } else {
    }
    %c0 = arith.constant 0 : index
    %c0_1 = arith.constant 0 : index
    %3 = vector.load %arg2[%c0, %c0_1] : memref<128x128xbf16, #tpu.memory_space<vmem>>, vector<128x128xbf16>
    %c0_2 = arith.constant 0 : index
    %c0_3 = arith.constant 0 : index
    %4 = vector.load %arg5[%c0_2, %c0_3] : memref<128x128xbf16, #tpu.memory_space<vmem>>, vector<128x128xbf16>
    %cst = arith.constant dense<0.000000e+00> : vector<128x128xf32>
    %5 = tpu.matmul %3, %4, %cst {dimension_numbers = #tpu.dot_dimension_numbers<[1], [0], [0], [1], [0, 0, 1, 1], [], []>} : vector<128x128xbf16>, vector<128x128xbf16>, vector<128x128xf32> -> vector<128x128xf32>
    %c0_4 = arith.constant 0 : index
    %c0_5 = arith.constant 0 : index
    %6 = vector.load %arg6[%c0_4, %c0_5] : memref<1x128xf32, #tpu.memory_space<vmem>>, vector<1x128xf32>
    %7 = vector.broadcast %6 : vector<1x128xf32> to vector<128x128xf32>
    %8 = arith.addf %5, %7 : vector<128x128xf32>
    %c0_6 = arith.constant 0 : index
    %c0_7 = arith.constant 0 : index
    %9 = vector.load %arg7[%c0_6, %c0_7] : memref<1x128xf32, #tpu.memory_space<vmem>>, vector<1x128xf32>
    %10 = vector.broadcast %9 : vector<1x128xf32> to vector<128x128xf32>
    %11 = arith.mulf %8, %10 : vector<128x128xf32>
    %cst_8 = arith.constant dense<0.000000e+00> : vector<128xf32>
    %12 = vector.multi_reduction <add>, %11, %cst_8 [1] : vector<128x128xf32> to vector<128xf32>
    %13 = vector.shape_cast %12 : vector<128xf32> to vector<128x1xf32>
    %c0_9 = arith.constant 0 : index
    %c0_10 = arith.constant 0 : index
    %14 = memref.load %arg8[%c0_9, %c0_10] : memref<1x1xf32, #tpu.memory_space<smem>>
    %15 = vector.broadcast %14 : f32 to vector<128x1xf32>
    %16 = arith.addf %13, %15 : vector<128x1xf32>
    %17 = arith.negf %16 : vector<128x1xf32>
    %18 = math.exp %17 : vector<128x1xf32>
    %cst_11 = arith.constant 1.000000e+00 : f32
    %19 = vector.broadcast %cst_11 : f32 to vector<128x1xf32>
    %20 = arith.addf %19, %18 : vector<128x1xf32>
    %21 = arith.divf %19, %20 : vector<128x1xf32>
    %22 = vector.broadcast %21 : vector<128x1xf32> to vector<128x128xf32>
    %23 = arith.mulf %8, %22 : vector<128x128xf32>
    %c0_12 = arith.constant 0 : index
    %c0_13 = arith.constant 0 : index
    %24 = vector.load %arg4[%c0_12, %c0_13] : memref<16x1xi32, #tpu.memory_space<vmem>>, vector<16x1xi32>
    %c0_14 = arith.constant 0 : index
    %c0_15 = arith.constant 0 : index
    %c0_16 = arith.constant 0 : index
    %25 = vector.load %arg3[%c0_14, %c0_15, %c0_16] : memref<1x1x128xi32, #tpu.memory_space<vmem>>, vector<1x1x128xi32>
    %26 = vector.shape_cast %25 : vector<1x1x128xi32> to vector<1x128xi32>
    %27 = vector.broadcast %24 : vector<16x1xi32> to vector<16x128xi32>
    %28 = vector.broadcast %26 : vector<1x128xi32> to vector<16x128xi32>
    %29 = arith.cmpi eq, %27, %28 : vector<16x128xi32>
    %30 = arith.extui %29 : vector<16x128xi1> to vector<16x128xi32>
    %31 = arith.sitofp %30 : vector<16x128xi32> to vector<16x128xf32>
    %32 = arith.truncf %31 : vector<16x128xf32> to vector<16x128xbf16>
    %c0_17 = arith.constant 0 : index
    %c0_18 = arith.constant 0 : index
    %c0_19 = arith.constant 0 : index
    %33 = vector.load %arg9[%c0_17, %c0_18, %c0_19] : memref<1x16x128xf32, #tpu.memory_space<vmem>>, vector<1x16x128xf32>
    %34 = vector.shape_cast %33 : vector<1x16x128xf32> to vector<16x128xf32>
    %35 = arith.truncf %23 : vector<128x128xf32> to vector<128x128xbf16>
    %cst_20 = arith.constant dense<0.000000e+00> : vector<16x128xf32>
    %36 = tpu.matmul %32, %35, %cst_20 {dimension_numbers = #tpu.dot_dimension_numbers<[1], [0], [0], [1], [0, 0, 1, 1], [], []>} : vector<16x128xbf16>, vector<128x128xbf16>, vector<16x128xf32> -> vector<16x128xf32>
    %37 = arith.addf %34, %36 : vector<16x128xf32>
    %c0_21 = arith.constant 0 : index
    %c0_22 = arith.constant 0 : index
    %c0_23 = arith.constant 0 : index
    %38 = vector.load %arg9[%c0_21, %c0_22, %c0_23] : memref<1x16x128xf32, #tpu.memory_space<vmem>>, vector<1x16x128xf32>
    %39 = vector.shape_cast %38 : vector<1x16x128xf32> to vector<16x128xf32>
    %40 = vector.shape_cast %37 : vector<16x128xf32> to vector<1x16x128xf32>
    tpu.vector_store %arg9[%c0_21, %c0_22, %c0_23], %40 {strides = array<i32>} : memref<1x16x128xf32, #tpu.memory_space<vmem>>, vector<1x16x128xf32>,
    return
  }
  func.func @transform_0(%arg0: i32, %arg1: i32) -> (i32, i32) {
    %c1_i32 = arith.constant 1 : i32
    %0 = arith.muli %arg0, %c1_i32 : i32
    %1 = arith.addi %0, %arg1 : i32
    %c0_i32 = arith.constant 0 : i32
    %c0_i32_0 = arith.constant 0 : i32
    return %1, %c0_i32 : i32, i32
  }
  func.func @transform_1(%arg0: i32, %arg1: i32) -> (i32, i32, i32) {
    %c1_i32 = arith.constant 1 : i32
    %0 = arith.muli %arg0, %c1_i32 : i32
    %1 = arith.addi %0, %arg1 : i32
    %c0_i32 = arith.constant 0 : i32
    %c0_i32_0 = arith.constant 0 : i32
    %c0_i32_1 = arith.constant 0 : i32
    return %1, %c0_i32, %c0_i32_0 : i32, i32, i32
  }
  func.func @transform_2(%arg0: i32, %arg1: i32) -> (i32, i32) {
    %c0_i32 = arith.constant 0 : i32
    %c0_i32_0 = arith.constant 0 : i32
    %c0_i32_1 = arith.constant 0 : i32
    return %c0_i32, %c0_i32_0 : i32, i32
  }
  func.func @transform_3(%arg0: i32, %arg1: i32) -> (i32, i32) {
    %c0_i32 = arith.constant 0 : i32
    %c0_i32_0 = arith.constant 0 : i32
    %c0_i32_1 = arith.constant 0 : i32
    return %c0_i32, %c0_i32_0 : i32, i32
  }
  func.func @transform_4(%arg0: i32, %arg1: i32) -> (i32, i32) {
    %c0_i32 = arith.constant 0 : i32
    %c0_i32_0 = arith.constant 0 : i32
    %c0_i32_1 = arith.constant 0 : i32
    return %c0_i32, %c0_i32_0 : i32, i32
  }
  func.func @transform_5(%arg0: i32, %arg1: i32) -> (i32, i32) {
    %c0_i32 = arith.constant 0 : i32
    %c0_i32_0 = arith.constant 0 : i32
    %c0_i32_1 = arith.constant 0 : i32
    return %c0_i32, %c0_i32_0 : i32, i32
  }
  func.func @transform_6(%arg0: i32, %arg1: i32) -> (i32, i32) {
    %c0_i32 = arith.constant 0 : i32
    %c0_i32_0 = arith.constant 0 : i32
    %c0_i32_1 = arith.constant 0 : i32
    return %c0_i32, %c0_i32_0 : i32, i32
  }
  func.func @transform_7(%arg0: i32, %arg1: i32) -> (i32, i32, i32) {
    %c0_i32 = arith.constant 0 : i32
    %c0_i32_0 = arith.constant 0 : i32
    %c0_i32_1 = arith.constant 0 : i32
    return %arg0, %c0_i32, %c0_i32_0 : i32, i32, i32
  }
}

</mosaic_0001>

<llo_original>
// kernel: etnn_messager_forward.1
$region0: #{etnn_messager_forward.1}
  #allocation0 [shape = 'u32[]', space=smem, size = 0x4, offset = 0x4, fixed_abs, tag = 'smem constant byte address 0x4 - core index']
  #allocation1 [shape = 'u32[72,128]{1,0:T(1,128)}', space=vmem, size = 0x9000, scoped, tag = 'internal scratch']
  #allocation2 [shape = 'f32[1,1]{1,0:T(1,128)S(6)}', space=smem, size = 0x200, scoped, tag = 'scoped memory for etnn_messager_forward.1']
  %s0 = inlined_call_operand.vmem [shape: bf16[128,128], index: 0, kind: input, shape index: {}]
  %s1 = inlined_call_operand.vmem [shape: s32[1,1,128], index: 1, kind: input, shape index: {}]
  %s2 = inlined_call_operand.vmem [shape: s32[16,1], index: 2, kind: input, shape index: {}]
  %s3 = inlined_call_operand.vmem [shape: bf16[128,128], index: 3, kind: input, shape index: {}]
  %s4 = inlined_call_operand.vmem [shape: f32[1,128], index: 4, kind: input, shape index: {}]
  %s5 = inlined_call_operand.vmem [shape: f32[1,128], index: 5, kind: input, shape index: {}]
  %s6 = inlined_call_operand.<no memory space> [shape: f32[1,1], index: 6, kind: input, shape index: {}]
  %s7 = inlined_call_operand.hbm [shape: f32[1,16,128], index: 7, kind: output, shape index: {}]
  %s8 = sld [smem:[#allocation0]]
  $region42: #{etnn_messager_forward.1} parent=0
    _
  %s10 = ssub.s32 1, %s8
  %s11 = scalar_select 0, %s10, %s8
  %12 = sst [smem:[#allocation2]] %s6
  $region1: #{etnn_messager_forward.1} parent=0
    #allocation3 [shape = 'u8[8192]{0}', space=vmem, size = 0x2000, scoped, tag = 'output window, operand 0, single buffered']
    #allocation4 [shape = 's32[1]{0}', space=sflag, size = 0x4, scoped, tag = 'scoped memory for etnn_messager_forward.1']
    %13 = vsyncpa [#allocation4], 0
    // Predicated region
    $region2: #{etnn_messager_forward.1} parent=1 // pred_check
      _
    $region3: #{etnn_messager_forward.1} parent=1 // pred_check_branch
      %15 = sbr.rel (0) target = $region5
    $region4: #{etnn_messager_forward.1} parent=1 // pred_region
      %s16 = sadd.s32 0, 0
      %s17 = smul.u32 16, %s16
      %p18 = scmp.lt.s32.totalorder %s17, 15
      %s19 = scalar_select %p18, %s17, 15
      %s20 = smul.addr %s19, 4
      %s21 = scalar_lea.vmem %s0, %s20
      %s22 = sadd.s32 0, 0
      %s23 = smul.u32 16, %s22
    $region5: #{etnn_messager_forward.1} parent=1 // pred_fallthru
      _
    // Predicated region
    $region6: #{etnn_messager_forward.1} parent=1 // pred_check
      _
    $region7: #{etnn_messager_forward.1} parent=1 // pred_check_branch
      %25 = sbr.rel (0) target = $region9
    $region8: #{etnn_messager_forward.1} parent=1 // pred_region
      %s26 = sadd.s32 0, 0
      %p27 = scmp.lt.s32.totalorder %s26, 0
      %s28 = scalar_select %p27, %s26, 0
      %s29 = scalar_lea.vmem %s1, %s28
      %s30 = sadd.s32 0, 0
    $region9: #{etnn_messager_forward.1} parent=1 // pred_fallthru
      _
    // Predicated region
    $region10: #{etnn_messager_forward.1} parent=1 // pred_check
      _
    $region11: #{etnn_messager_forward.1} parent=1 // pred_check_branch
      %32 = sbr.rel (0) target = $region13
    $region12: #{etnn_messager_forward.1} parent=1 // pred_region
      _
    $region13: #{etnn_messager_forward.1} parent=1 // pred_fallthru
      _
    // Predicated region
    $region14: #{etnn_messager_forward.1} parent=1 // pred_check
      _
    $region15: #{etnn_messager_forward.1} parent=1 // pred_check_branch
      %34 = sbr.rel (0) target = $region17
    $region16: #{etnn_messager_forward.1} parent=1 // pred_region
      _
    $region17: #{etnn_messager_forward.1} parent=1 // pred_fallthru
      _
    // Predicated region
    $region18: #{etnn_messager_forward.1} parent=1 // pred_check
      _
    $region19: #{etnn_messager_forward.1} parent=1 // pred_check_branch
      %36 = sbr.rel (0) target = $region21
    $region20: #{etnn_messager_forward.1} parent=1 // pred_region
      _
    $region21: #{etnn_messager_forward.1} parent=1 // pred_fallthru
      _
    // Predicated region
    $region22: #{etnn_messager_forward.1} parent=1 // pred_check
      _
    $region23: #{etnn_messager_forward.1} parent=1 // pred_check_branch
      %38 = sbr.rel (0) target = $region25
    $region24: #{etnn_messager_forward.1} parent=1 // pred_region
      _
    $region25: #{etnn_messager_forward.1} parent=1 // pred_fallthru
      _
    // Predicated region
    $region26: #{etnn_messager_forward.1} parent=1 // pred_check
      _
    $region27: #{etnn_messager_forward.1} parent=1 // pred_check_branch
      %40 = sbr.rel (0) target = $region29
    $region28: #{etnn_messager_forward.1} parent=1 // pred_region
      _
    $region29: #{etnn_messager_forward.1} parent=1 // pred_fallthru
      _
    %s41 = sadd.s32 0, 0
    %s42 = smul.u32 16, %s41
    %p43 = scmp.lt.s32.totalorder %s42, 15
    %s44 = scalar_select %p43, %s42, 15
    %s45 = smul.addr %s44, 4
    %s46 = scalar_lea.vmem %s0, %s45
    %s47 = sadd.s32 0, 0
    %p48 = scmp.lt.s32.totalorder %s47, 0
    %s49 = scalar_select %p48, %s47, 0
    %s50 = scalar_lea.vmem %s1, %s49
    %s51 = sadd.s32 0, 0
    %s52 = smul.u32 16, %s51
    %p53 = scmp.lt.s32.totalorder %s52, 15
    %s54 = scalar_select %p53, %s52, 15
    %s55 = smul.addr %s54, 4
    %s56 = scalar_lea.vmem %s0, %s55
    %s57 = sadd.s32 0, 0
    %s58 = smul.u32 16, %s57
    %s59 = sadd.s32 0, 0
    %p60 = scmp.lt.s32.totalorder %s59, 0
    %s61 = scalar_select %p60, %s59, 0
    %s62 = scalar_lea.vmem %s1, %s61
    %s63 = sadd.s32 0, 0
    %p64 = scmp.eq.s32.totalorder 0, 0
    // Predicated region
    $region30: #{etnn_messager_forward.1} parent=1 // pred_check
      %p65 = pneg %p64
    $region31: #{etnn_messager_forward.1} parent=1 // pred_check_branch
      %67 = sbr.rel (%p65) target = $region33
    $region32: #{etnn_messager_forward.1} parent=1 // pred_region
      %68 = vst [vmem:[#allocation3] sm:$0xff] 0.0
      %69 = vst [vmem:[#allocation3 + $0x8] sm:$0xff] 0.0
    $region33: #{etnn_messager_forward.1} parent=1 // pred_fallthru
      _
    %v70 = vld [vmem:[%s56] sm:$0xf]
    %v71 = vld [vmem:[%s56 + $0x4] sm:$0xf]
    %v72 = vld [vmem:[%s56 + $0x8] sm:$0xf]
    %v73 = vld [vmem:[%s56 + $0xc] sm:$0xf]
    %v74 = vld [vmem:[%s56 + $0x10] sm:$0xf]
    %v75 = vld [vmem:[%s56 + $0x14] sm:$0xf]
    %v76 = vld [vmem:[%s56 + $0x18] sm:$0xf]
    %v77 = vld [vmem:[%s56 + $0x1c] sm:$0xf]
    %v78 = vld [vmem:[%s56 + $0x20] sm:$0xf]
    %v79 = vld [vmem:[%s56 + $0x24] sm:$0xf]
    %v80 = vld [vmem:[%s56 + $0x28] sm:$0xf]
    %v81 = vld [vmem:[%s56 + $0x2c] sm:$0xf]
    %v82 = vld [vmem:[%s56 + $0x30] sm:$0xf]
    %v83 = vld [vmem:[%s56 + $0x34] sm:$0xf]
    %v84 = vld [vmem:[%s56 + $0x38] sm:$0xf]
    %v85 = vld [vmem:[%s56 + $0x3c] sm:$0xf]
    %v86 = vld [vmem:[%s3] sm:$0xf]
    %v87 = vld [vmem:[%s3 + $0x4] sm:$0xf]
    %v88 = vld [vmem:[%s3 + $0x8] sm:$0xf]
    %v89 = vld [vmem:[%s3 + $0xc] sm:$0xf]
    %v90 = vld [vmem:[%s3 + $0x10] sm:$0xf]
    %v91 = vld [vmem:[%s3 + $0x14] sm:$0xf]
    %v92 = vld [vmem:[%s3 + $0x18] sm:$0xf]
    %v93 = vld [vmem:[%s3 + $0x1c] sm:$0xf]
    %v94 = vld [vmem:[%s3 + $0x20] sm:$0xf]
    %v95 = vld [vmem:[%s3 + $0x24] sm:$0xf]
    %v96 = vld [vmem:[%s3 + $0x28] sm:$0xf]
    %v97 = vld [vmem:[%s3 + $0x2c] sm:$0xf]
    %v98 = vld [vmem:[%s3 + $0x30] sm:$0xf]
    %v99 = vld [vmem:[%s3 + $0x34] sm:$0xf]
    %v100 = vld [vmem:[%s3 + $0x38] sm:$0xf]
    %v101 = vld [vmem:[%s3 + $0x3c] sm:$0xf]
    %v102 = vld [vmem:[%s4] sm:$0x1]
    %v104 = vperm.slane %v102, 0
    %v122 = vunpack.c.l.b16 %v70
    %v123 = vunpack.c.l.b16 %v71
    %v124 = vunpack.c.l.b16 %v72
    %v125 = vunpack.c.l.b16 %v73
    %v126 = vunpack.c.l.b16 %v74
    %v127 = vunpack.c.l.b16 %v75
    %v128 = vunpack.c.l.b16 %v76
    %v129 = vunpack.c.l.b16 %v77
    %v130 = vunpack.c.l.b16 %v78
    %v131 = vunpack.c.l.b16 %v79
    %v132 = vunpack.c.l.b16 %v80
    %v133 = vunpack.c.l.b16 %v81
    %v134 = vunpack.c.l.b16 %v82
    %v135 = vunpack.c.l.b16 %v83
    %v136 = vunpack.c.l.b16 %v84
    %v137 = vunpack.c.l.b16 %v85
    %v138 = vpack.c.b16 %v123, %v122
    %v139 = vpack.c.b16 %v125, %v124
    %v140 = vpack.c.b16 %v127, %v126
    %v141 = vpack.c.b16 %v129, %v128
    %v142 = vpack.c.b16 %v131, %v130
    %v143 = vpack.c.b16 %v133, %v132
    %v144 = vpack.c.b16 %v135, %v134
    %v145 = vpack.c.b16 %v137, %v136
    %v170 = vunpack.c.l.b16 %v86
    %v171 = vunpack.c.l.b16 %v87
    %v172 = vunpack.c.l.b16 %v88
    %v173 = vunpack.c.l.b16 %v89
    %v174 = vunpack.c.l.b16 %v90
    %v175 = vunpack.c.l.b16 %v91
    %v176 = vunpack.c.l.b16 %v92
    %v177 = vunpack.c.l.b16 %v93
    %v178 = vunpack.c.l.b16 %v94
    %v179 = vunpack.c.l.b16 %v95
    %v180 = vunpack.c.l.b16 %v96
    %v181 = vunpack.c.l.b16 %v97
    %v182 = vunpack.c.l.b16 %v98
    %v183 = vunpack.c.l.b16 %v99
    %v184 = vunpack.c.l.b16 %v100
    %v185 = vunpack.c.l.b16 %v101
    %v186 = vpack.c.b16 %v171, %v170
    %v187 = vpack.c.b16 %v173, %v172
    %v188 = vpack.c.b16 %v175, %v174
    %v189 = vpack.c.b16 %v177, %v176
    %v190 = vpack.c.b16 %v179, %v178
    %v191 = vpack.c.b16 %v181, %v180
    %v192 = vpack.c.b16 %v183, %v182
    %v193 = vpack.c.b16 %v185, %v184
    %202 = vmatpush.bf16.msra.mxu0 %v193
    %203 = vmatpush.bf16.msra.mxu0 %v192
    %204 = vmatpush.bf16.msra.mxu0 %v191
    %205 = vmatpush.bf16.msra.mxu0 %v190
    %206 = vmatpush.bf16.msra.mxu0 %v189
    %207 = vmatpush.bf16.msra.mxu0 %v188
    %208 = vmatpush.bf16.msra.mxu0 %v187
    %209 = vmatpush.bf16.msra.mxu0 %v186
    %210 = vmatmul.bf16.gmra.mxu0 %v138
    %v211 = vpop.f32.mrf.mxu0
    %v212 = vadd.f32 %v104, %v211
    %v213 = vpop.f32.mrf.mxu0
    %v214 = vadd.f32 %v104, %v213
    %215 = vmatmul.bf16.gmra.mxu0 %v139
    %v216 = vpop.f32.mrf.mxu0
    %v217 = vadd.f32 %v104, %v216
    %v218 = vpop.f32.mrf.mxu0
    %v219 = vadd.f32 %v104, %v218
    %220 = vmatmul.bf16.gmra.mxu0 %v140
    %v221 = vpop.f32.mrf.mxu0
    %v222 = vadd.f32 %v104, %v221
    %v223 = vpop.f32.mrf.mxu0
    %v224 = vadd.f32 %v104, %v223
    %225 = vmatmul.bf16.gmra.mxu0 %v141
    %v226 = vpop.f32.mrf.mxu0
    %v227 = vadd.f32 %v104, %v226
    %v228 = vpop.f32.mrf.mxu0
    %v229 = vadd.f32 %v104, %v228
    %230 = vmatmul.bf16.gmra.mxu0 %v142
    %v231 = vpop.f32.mrf.mxu0
    %v232 = vadd.f32 %v104, %v231
    %v233 = vpop.f32.mrf.mxu0
    %v234 = vadd.f32 %v104, %v233
    %235 = vmatmul.bf16.gmra.mxu0 %v143
    %v236 = vpop.f32.mrf.mxu0
    %v237 = vadd.f32 %v104, %v236
    %v238 = vpop.f32.mrf.mxu0
    %v239 = vadd.f32 %v104, %v238
    %240 = vmatmul.bf16.gmra.mxu0 %v144
    %v241 = vpop.f32.mrf.mxu0
    %v242 = vadd.f32 %v104, %v241
    %v243 = vpop.f32.mrf.mxu0
    %v244 = vadd.f32 %v104, %v243
    %245 = vmatmul.bf16.gmra.mxu0 %v145
    %v246 = vpop.f32.mrf.mxu0
    %v247 = vadd.f32 %v104, %v246
    %v248 = vpop.f32.mrf.mxu0
    %v249 = vadd.f32 %v104, %v248
    %250 = vdwg.mxu0
    %v251 = vld [vmem:[%s5] sm:$0x1]
    %v253 = vperm.slane %v251, 0
    %v255 = vmul.f32 %v212, %v253
    %v256 = vmul.f32 %v214, %v253
    %v257 = vmul.f32 %v217, %v253
    %v258 = vmul.f32 %v219, %v253
    %v259 = vmul.f32 %v222, %v253
    %v260 = vmul.f32 %v224, %v253
    %v261 = vmul.f32 %v227, %v253
    %v262 = vmul.f32 %v229, %v253
    %v263 = vmul.f32 %v232, %v253
    %v264 = vmul.f32 %v234, %v253
    %v265 = vmul.f32 %v237, %v253
    %v266 = vmul.f32 %v239, %v253
    %v267 = vmul.f32 %v242, %v253
    %v268 = vmul.f32 %v244, %v253
    %v269 = vmul.f32 %v247, %v253
    %v270 = vmul.f32 %v249, %v253
    %271 = vadd.xlane.f32.xlu0 %v255
    %v272 = vpop.xlane.xlu0 %271
    %273 = vadd.xlane.f32.xlu0 %v256
    %v274 = vpop.xlane.xlu0 %273
    %275 = vadd.xlane.f32.xlu0 %v257
    %v276 = vpop.xlane.xlu0 %275
    %277 = vadd.xlane.f32.xlu0 %v258
    %v278 = vpop.xlane.xlu0 %277
    %279 = vadd.xlane.f32.xlu0 %v259
    %v280 = vpop.xlane.xlu0 %279
    %281 = vadd.xlane.f32.xlu0 %v260
    %v282 = vpop.xlane.xlu0 %281
    %283 = vadd.xlane.f32.xlu0 %v261
    %v284 = vpop.xlane.xlu0 %283
    %285 = vadd.xlane.f32.xlu0 %v262
    %v286 = vpop.xlane.xlu0 %285
    %287 = vadd.xlane.f32.xlu0 %v263
    %v288 = vpop.xlane.xlu0 %287
    %289 = vadd.xlane.f32.xlu0 %v264
    %v290 = vpop.xlane.xlu0 %289
    %291 = vadd.xlane.f32.xlu0 %v265
    %v292 = vpop.xlane.xlu0 %291
    %293 = vadd.xlane.f32.xlu0 %v266
    %v294 = vpop.xlane.xlu0 %293
    %295 = vadd.xlane.f32.xlu0 %v267
    %v296 = vpop.xlane.xlu0 %295
    %297 = vadd.xlane.f32.xlu0 %v268
    %v298 = vpop.xlane.xlu0 %297
    %299 = vadd.xlane.f32.xlu0 %v269
    %v300 = vpop.xlane.xlu0 %299
    %301 = vadd.xlane.f32.xlu0 %v270
    %v302 = vpop.xlane.xlu0 %301
    %s303 = sld [smem:[#allocation2]]
    %v304 = vstv %s303
    %v305 = vadd.f32 %v272, %v304
    %v306 = vadd.f32 %v274, %v304
    %v307 = vadd.f32 %v276, %v304
    %v308 = vadd.f32 %v278, %v304
    %v309 = vadd.f32 %v280, %v304
    %v310 = vadd.f32 %v282, %v304
    %v311 = vadd.f32 %v284, %v304
    %v312 = vadd.f32 %v286, %v304
    %v313 = vadd.f32 %v288, %v304
    %v314 = vadd.f32 %v290, %v304
    %v315 = vadd.f32 %v292, %v304
    %v316 = vadd.f32 %v294, %v304
    %v317 = vadd.f32 %v296, %v304
    %v318 = vadd.f32 %v298, %v304
    %v319 = vadd.f32 %v300, %v304
    %v320 = vadd.f32 %v302, %v304
    %v321 = vxor.u32 %v305, 2147483648
    %v322 = vxor.u32 %v306, 2147483648
    %v323 = vxor.u32 %v307, 2147483648
    %v324 = vxor.u32 %v308, 2147483648
    %v325 = vxor.u32 %v309, 2147483648
    %v326 = vxor.u32 %v310, 2147483648
    %v327 = vxor.u32 %v311, 2147483648
    %v328 = vxor.u32 %v312, 2147483648
    %v329 = vxor.u32 %v313, 2147483648
    %v330 = vxor.u32 %v314, 2147483648
    %v331 = vxor.u32 %v315, 2147483648
    %v332 = vxor.u32 %v316, 2147483648
    %v333 = vxor.u32 %v317, 2147483648
    %v334 = vxor.u32 %v318, 2147483648
    %v335 = vxor.u32 %v319, 2147483648
    %v336 = vxor.u32 %v320, 2147483648
    %v337 = vmul.f32 %v321, 1.442695
    %v338 = vpow.pop %v337
    %v339 = vmul.f32 %v322, 1.442695
    %v340 = vpow.pop %v339
    %v341 = vmul.f32 %v323, 1.442695
    %v342 = vpow.pop %v341
    %v343 = vmul.f32 %v324, 1.442695
    %v344 = vpow.pop %v343
    %v345 = vmul.f32 %v325, 1.442695
    %v346 = vpow.pop %v345
    %v347 = vmul.f32 %v326, 1.442695
    %v348 = vpow.pop %v347
    %v349 = vmul.f32 %v327, 1.442695
    %v350 = vpow.pop %v349
    %v351 = vmul.f32 %v328, 1.442695
    %v352 = vpow.pop %v351
    %v353 = vmul.f32 %v329, 1.442695
    %v354 = vpow.pop %v353
    %v355 = vmul.f32 %v330, 1.442695
    %v356 = vpow.pop %v355
    %v357 = vmul.f32 %v331, 1.442695
    %v358 = vpow.pop %v357
    %v359 = vmul.f32 %v332, 1.442695
    %v360 = vpow.pop %v359
    %v361 = vmul.f32 %v333, 1.442695
    %v362 = vpow.pop %v361
    %v363 = vmul.f32 %v334, 1.442695
    %v364 = vpow.pop %v363
    %v365 = vmul.f32 %v335, 1.442695
    %v366 = vpow.pop %v365
    %v367 = vmul.f32 %v336, 1.442695
    %v368 = vpow.pop %v367
    %v369 = vadd.f32 %v338, 1.0
    %v370 = vadd.f32 %v340, 1.0
    %v371 = vadd.f32 %v342, 1.0
    %v372 = vadd.f32 %v344, 1.0
    %v373 = vadd.f32 %v346, 1.0
    %v374 = vadd.f32 %v348, 1.0
    %v375 = vadd.f32 %v350, 1.0
    %v376 = vadd.f32 %v352, 1.0
    %v377 = vadd.f32 %v354, 1.0
    %v378 = vadd.f32 %v356, 1.0
    %v379 = vadd.f32 %v358, 1.0
    %v380 = vadd.f32 %v360, 1.0
    %v381 = vadd.f32 %v362, 1.0
    %v382 = vadd.f32 %v364, 1.0
    %v383 = vadd.f32 %v366, 1.0
    %v384 = vadd.f32 %v368, 1.0
    %v385 = vrcp.pop %v369
    %v386 = vmul.f32 %v369, %v385
    %v387 = vsub.f32 1.0, %v386
    %v388 = vmul.f32 %v385, %v387
    %v389 = vadd.f32 %v385, %v388
    %vm390 = vweird.f32 %v369
    %vm391 = vweird.f32 %v385
    %vm392 = vmor %vm390, %vm391
    %v393 = vsel %vm392, %v385, %v389
    %v394 = vand.u32 2147483647, %v369
    %vm395 = vcmp.eq.f32.partialorder %v394, 8.507059e+37
    %v396 = vand.u32 %v369, 2147483648
    %v397 = vor.u32 1.1754944e-38, %v396
    %v398 = vsel %vm395, %v397, %v393
    %v399 = vmul.f32 1.0, %v398
    %v400 = vrcp.pop %v370
    %v401 = vmul.f32 %v370, %v400
    %v402 = vsub.f32 1.0, %v401
    %v403 = vmul.f32 %v400, %v402
    %v404 = vadd.f32 %v400, %v403
    %vm405 = vweird.f32 %v370
    %vm406 = vweird.f32 %v400
    %vm407 = vmor %vm405, %vm406
    %v408 = vsel %vm407, %v400, %v404
    %v409 = vand.u32 2147483647, %v370
    %vm410 = vcmp.eq.f32.partialorder %v409, 8.507059e+37
    %v411 = vand.u32 %v370, 2147483648
    %v412 = vor.u32 1.1754944e-38, %v411
    %v413 = vsel %vm410, %v412, %v408
    %v414 = vmul.f32 1.0, %v413
    %v415 = vrcp.pop %v371
    %v416 = vmul.f32 %v371, %v415
    %v417 = vsub.f32 1.0, %v416
    %v418 = vmul.f32 %v415, %v417
    %v419 = vadd.f32 %v415, %v418
    %vm420 = vweird.f32 %v371
    %vm421 = vweird.f32 %v415
    %vm422 = vmor %vm420, %vm421
    %v423 = vsel %vm422, %v415, %v419
    %v424 = vand.u32 2147483647, %v371
    %vm425 = vcmp.eq.f32.partialorder %v424, 8.507059e+37
    %v426 = vand.u32 %v371, 2147483648
    %v427 = vor.u32 1.1754944e-38, %v426
    %v428 = vsel %vm425, %v427, %v423
    %v429 = vmul.f32 1.0, %v428
    %v430 = vrcp.pop %v372
    %v431 = vmul.f32 %v372, %v430
    %v432 = vsub.f32 1.0, %v431
    %v433 = vmul.f32 %v430, %v432
    %v434 = vadd.f32 %v430, %v433
    %vm435 = vweird.f32 %v372
    %vm436 = vweird.f32 %v430
    %vm437 = vmor %vm435, %vm436
    %v438 = vsel %vm437, %v430, %v434
    %v439 = vand.u32 2147483647, %v372
    %vm440 = vcmp.eq.f32.partialorder %v439, 8.507059e+37
    %v441 = vand.u32 %v372, 2147483648
    %v442 = vor.u32 1.1754944e-38, %v441
    %v443 = vsel %vm440, %v442, %v438
    %v444 = vmul.f32 1.0, %v443
    %v445 = vrcp.pop %v373
    %v446 = vmul.f32 %v373, %v445
    %v447 = vsub.f32 1.0, %v446
    %v448 = vmul.f32 %v445, %v447
    %v449 = vadd.f32 %v445, %v448
    %vm450 = vweird.f32 %v373
    %vm451 = vweird.f32 %v445
    %vm452 = vmor %vm450, %vm451
    %v453 = vsel %vm452, %v445, %v449
    %v454 = vand.u32 2147483647, %v373
    %vm455 = vcmp.eq.f32.partialorder %v454, 8.507059e+37
    %v456 = vand.u32 %v373, 2147483648
    %v457 = vor.u32 1.1754944e-38, %v456
    %v458 = vsel %vm455, %v457, %v453
    %v459 = vmul.f32 1.0, %v458
    %v460 = vrcp.pop %v374
    %v461 = vmul.f32 %v374, %v460
    %v462 = vsub.f32 1.0, %v461
    %v463 = vmul.f32 %v460, %v462
    %v464 = vadd.f32 %v460, %v463
    %vm465 = vweird.f32 %v374
    %vm466 = vweird.f32 %v460
    %vm467 = vmor %vm465, %vm466
    %v468 = vsel %vm467, %v460, %v464
    %v469 = vand.u32 2147483647, %v374
    %vm470 = vcmp.eq.f32.partialorder %v469, 8.507059e+37
    %v471 = vand.u32 %v374, 2147483648
    %v472 = vor.u32 1.1754944e-38, %v471
    %v473 = vsel %vm470, %v472, %v468
    %v474 = vmul.f32 1.0, %v473
    %v475 = vrcp.pop %v375
    %v476 = vmul.f32 %v375, %v475
    %v477 = vsub.f32 1.0, %v476
    %v478 = vmul.f32 %v475, %v477
    %v479 = vadd.f32 %v475, %v478
    %vm480 = vweird.f32 %v375
    %vm481 = vweird.f32 %v475
    %vm482 = vmor %vm480, %vm481
    %v483 = vsel %vm482, %v475, %v479
    %v484 = vand.u32 2147483647, %v375
    %vm485 = vcmp.eq.f32.partialorder %v484, 8.507059e+37
    %v486 = vand.u32 %v375, 2147483648
    %v487 = vor.u32 1.1754944e-38, %v486
    %v488 = vsel %vm485, %v487, %v483
    %v489 = vmul.f32 1.0, %v488
    %v490 = vrcp.pop %v376
    %v491 = vmul.f32 %v376, %v490
    %v492 = vsub.f32 1.0, %v491
    %v493 = vmul.f32 %v490, %v492
    %v494 = vadd.f32 %v490, %v493
    %vm495 = vweird.f32 %v376
    %vm496 = vweird.f32 %v490
    %vm497 = vmor %vm495, %vm496
    %v498 = vsel %vm497, %v490, %v494
    %v499 = vand.u32 2147483647, %v376
    %vm500 = vcmp.eq.f32.partialorder %v499, 8.507059e+37
    %v501 = vand.u32 %v376, 2147483648
    %v502 = vor.u32 1.1754944e-38, %v501
    %v503 = vsel %vm500, %v502, %v498
    %v504 = vmul.f32 1.0, %v503
    %v505 = vrcp.pop %v377
    %v506 = vmul.f32 %v377, %v505
    %v507 = vsub.f32 1.0, %v506
    %v508 = vmul.f32 %v505, %v507
    %v509 = vadd.f32 %v505, %v508
    %vm510 = vweird.f32 %v377
    %vm511 = vweird.f32 %v505
    %vm512 = vmor %vm510, %vm511
    %v513 = vsel %vm512, %v505, %v509
    %v514 = vand.u32 2147483647, %v377
    %vm515 = vcmp.eq.f32.partialorder %v514, 8.507059e+37
    %v516 = vand.u32 %v377, 2147483648
    %v517 = vor.u32 1.1754944e-38, %v516
    %v518 = vsel %vm515, %v517, %v513
    %v519 = vmul.f32 1.0, %v518
    %v520 = vrcp.pop %v378
    %v521 = vmul.f32 %v378, %v520
    %v522 = vsub.f32 1.0, %v521
    %v523 = vmul.f32 %v520, %v522
    %v524 = vadd.f32 %v520, %v523
    %vm525 = vweird.f32 %v378
    %vm526 = vweird.f32 %v520
    %vm527 = vmor %vm525, %vm526
    %v528 = vsel %vm527, %v520, %v524
    %v529 = vand.u32 2147483647, %v378
    %vm530 = vcmp.eq.f32.partialorder %v529, 8.507059e+37
    %v531 = vand.u32 %v378, 2147483648
    %v532 = vor.u32 1.1754944e-38, %v531
    %v533 = vsel %vm530, %v532, %v528
    %v534 = vmul.f32 1.0, %v533
    %v535 = vrcp.pop %v379
    %v536 = vmul.f32 %v379, %v535
    %v537 = vsub.f32 1.0, %v536
    %v538 = vmul.f32 %v535, %v537
    %v539 = vadd.f32 %v535, %v538
    %vm540 = vweird.f32 %v379
    %vm541 = vweird.f32 %v535
    %vm542 = vmor %vm540, %vm541
    %v543 = vsel %vm542, %v535, %v539
    %v544 = vand.u32 2147483647, %v379
    %vm545 = vcmp.eq.f32.partialorder %v544, 8.507059e+37
    %v546 = vand.u32 %v379, 2147483648
    %v547 = vor.u32 1.1754944e-38, %v546
    %v548 = vsel %vm545, %v547, %v543
    %v549 = vmul.f32 1.0, %v548
    %v550 = vrcp.pop %v380
    %v551 = vmul.f32 %v380, %v550
    %v552 = vsub.f32 1.0, %v551
    %v553 = vmul.f32 %v550, %v552
    %v554 = vadd.f32 %v550, %v553
    %vm555 = vweird.f32 %v380
    %vm556 = vweird.f32 %v550
    %vm557 = vmor %vm555, %vm556
    %v558 = vsel %vm557, %v550, %v554
    %v559 = vand.u32 2147483647, %v380
    %vm560 = vcmp.eq.f32.partialorder %v559, 8.507059e+37
    %v561 = vand.u32 %v380, 2147483648
    %v562 = vor.u32 1.1754944e-38, %v561
    %v563 = vsel %vm560, %v562, %v558
    %v564 = vmul.f32 1.0, %v563
    %v565 = vrcp.pop %v381
    %v566 = vmul.f32 %v381, %v565
    %v567 = vsub.f32 1.0, %v566
    %v568 = vmul.f32 %v565, %v567
    %v569 = vadd.f32 %v565, %v568
    %vm570 = vweird.f32 %v381
    %vm571 = vweird.f32 %v565
    %vm572 = vmor %vm570, %vm571
    %v573 = vsel %vm572, %v565, %v569
    %v574 = vand.u32 2147483647, %v381
    %vm575 = vcmp.eq.f32.partialorder %v574, 8.507059e+37
    %v576 = vand.u32 %v381, 2147483648
    %v577 = vor.u32 1.1754944e-38, %v576
    %v578 = vsel %vm575, %v577, %v573
    %v579 = vmul.f32 1.0, %v578
    %v580 = vrcp.pop %v382
    %v581 = vmul.f32 %v382, %v580
    %v582 = vsub.f32 1.0, %v581
    %v583 = vmul.f32 %v580, %v582
    %v584 = vadd.f32 %v580, %v583
    %vm585 = vweird.f32 %v382
    %vm586 = vweird.f32 %v580
    %vm587 = vmor %vm585, %vm586
    %v588 = vsel %vm587, %v580, %v584
    %v589 = vand.u32 2147483647, %v382
    %vm590 = vcmp.eq.f32.partialorder %v589, 8.507059e+37
    %v591 = vand.u32 %v382, 2147483648
    %v592 = vor.u32 1.1754944e-38, %v591
    %v593 = vsel %vm590, %v592, %v588
    %v594 = vmul.f32 1.0, %v593
    %v595 = vrcp.pop %v383
    %v596 = vmul.f32 %v383, %v595
    %v597 = vsub.f32 1.0, %v596
    %v598 = vmul.f32 %v595, %v597
    %v599 = vadd.f32 %v595, %v598
    %vm600 = vweird.f32 %v383
    %vm601 = vweird.f32 %v595
    %vm602 = vmor %vm600, %vm601
    %v603 = vsel %vm602, %v595, %v599
    %v604 = vand.u32 2147483647, %v383
    %vm605 = vcmp.eq.f32.partialorder %v604, 8.507059e+37
    %v606 = vand.u32 %v383, 2147483648
    %v607 = vor.u32 1.1754944e-38, %v606
    %v608 = vsel %vm605, %v607, %v603
    %v609 = vmul.f32 1.0, %v608
    %v610 = vrcp.pop %v384
    %v611 = vmul.f32 %v384, %v610
    %v612 = vsub.f32 1.0, %v611
    %v613 = vmul.f32 %v610, %v612
    %v614 = vadd.f32 %v610, %v613
    %vm615 = vweird.f32 %v384
    %vm616 = vweird.f32 %v610
    %vm617 = vmor %vm615, %vm616
    %v618 = vsel %vm617, %v610, %v614
    %v619 = vand.u32 2147483647, %v384
    %vm620 = vcmp.eq.f32.partialorder %v619, 8.507059e+37
    %v621 = vand.u32 %v384, 2147483648
    %v622 = vor.u32 1.1754944e-38, %v621
    %v623 = vsel %vm620, %v622, %v618
    %v624 = vmul.f32 1.0, %v623
    %v625 = vmul.f32 %v212, %v399
    %v626 = vmul.f32 %v214, %v414
    %v627 = vmul.f32 %v217, %v429
    %v628 = vmul.f32 %v219, %v444
    %v629 = vmul.f32 %v222, %v459
    %v630 = vmul.f32 %v224, %v474
    %v631 = vmul.f32 %v227, %v489
    %v632 = vmul.f32 %v229, %v504
    %v633 = vmul.f32 %v232, %v519
    %v634 = vmul.f32 %v234, %v534
    %v635 = vmul.f32 %v237, %v549
    %v636 = vmul.f32 %v239, %v564
    %v637 = vmul.f32 %v242, %v579
    %v638 = vmul.f32 %v244, %v594
    %v639 = vmul.f32 %v247, %v609
    %v640 = vmul.f32 %v249, %v624
    %v641 = vld [vmem:[%s2] sm:$0xff]
    %v642 = vld [vmem:[%s2 + $0x8] sm:$0xff]
    %v643 = vld [vmem:[%s62] sm:$0x1]
    %644 = vset.pattern.permute.xlu0 0
    %645 = vperm.xlu0 %644, %v641
    %v646 = vpop.permute.xlu0 %645
    %647 = vset.pattern.permute.xlu0 0
    %648 = vperm.xlu0 %647, %v642
    %v649 = vpop.permute.xlu0 %648
    %v650 = vperm.slane %v643, 0
    %vm651 = vcmp.eq.s32.totalorder %v646, %v650
    %vm652 = vcmp.eq.s32.totalorder %v649, %v650
    %v653 = vsel %vm651, 1, 0
    %v654 = vsel %vm652, 1, 0
    %v655 = vcvt.s32.f32 %v653
    %v656 = vcvt.s32.f32 %v654
    %v657 = vpack.c.bf16 %v656, %v655
    %v658 = vld [vmem:[#allocation3] sm:$0xff]
    %v659 = vld [vmem:[#allocation3 + $0x8] sm:$0xff]
    %v660 = vpack.c.bf16 %v626, %v625
    %v661 = vpack.c.bf16 %v628, %v627
    %v662 = vpack.c.bf16 %v630, %v629
    %v663 = vpack.c.bf16 %v632, %v631
    %v664 = vpack.c.bf16 %v634, %v633
    %v665 = vpack.c.bf16 %v636, %v635
    %v666 = vpack.c.bf16 %v638, %v637
    %v667 = vpack.c.bf16 %v640, %v639
    %668 = vmatpush.bf16.msra.mxu0 %v667
    %669 = vmatpush.bf16.msra.mxu0 %v666
    %670 = vmatpush.bf16.msra.mxu0 %v665
    %671 = vmatpush.bf16.msra.mxu0 %v664
    %672 = vmatpush.bf16.msra.mxu0 %v663
    %673 = vmatpush.bf16.msra.mxu0 %v662
    %674 = vmatpush.bf16.msra.mxu0 %v661
    %675 = vmatpush.bf16.msra.mxu0 %v660
    %676 = vmatmul.bf16.gmra.mxu0 %v657
    %v677 = vpop.f32.mrf.mxu0
    %v678 = vadd.f32 0.0, %v677
    %v679 = vpop.f32.mrf.mxu0
    %v680 = vadd.f32 0.0, %v679
    %681 = vdwg.mxu0
    %v682 = vadd.f32 %v658, %v678
    %v683 = vadd.f32 %v659, %v680
    %684 = vst [vmem:[#allocation3] sm:$0xff] %v682
    %685 = vst [vmem:[#allocation3 + $0x8] sm:$0xff] %v683
    // Predicated region
    $region34: #{etnn_messager_forward.1} parent=1 // pred_check
      _
    $region35: #{etnn_messager_forward.1} parent=1 // pred_check_branch
      %687 = sbr.rel (0) target = $region37
    $region36: #{etnn_messager_forward.1} parent=1 // pred_region
      %689 = vsyncadd [#allocation4], 0
      %s690 = sshll.u32 [#allocation3], 4
      %s691 = int_to_ptr.vmem [resolvable:$true] %s690
      %s692 = sshll.u32 %s7, 4
      %s693 = int_to_ptr.hbm [resolvable:$true] %s692
      %698 = dma.vmem_to_hbm [thread:$0]  %s691, 256, %s693, [#allocation4], 128, 128, 8
    $region37: #{etnn_messager_forward.1} parent=1 // pred_fallthru
      _
    // Predicated region
    $region38: #{etnn_messager_forward.1} parent=1 // pred_check
      _
    $region39: #{etnn_messager_forward.1} parent=1 // pred_check_branch
      %700 = sbr.rel (0) target = $region41
    $region40: #{etnn_messager_forward.1} parent=1 // pred_region
      %702 = dma.done [#allocation4], 256
    $region41: #{etnn_messager_forward.1} parent=1 // pred_fallthru
      _
    %703 = vsyncpa [#allocation4], 1

</llo_original>
